<compile_context>
chip_gen: v5e
topology: v5e:2x2
jax: 0.10.0
libtpu: 0.0.40
codegen_flags: <defaults>
</compile_context>

<pallas_src>
import math
import functools

import jax
import jax.numpy as jnp
from jax import lax
from jax.experimental import pallas as pl
from jax.experimental.pallas import tpu as pltpu


def attention_layer_kernel(q_ref, k_ref, v_ref,
                           wq_ref, bq_ref, wk_ref, bk_ref,
                           wv_ref, bv_ref, wo_ref, bo_ref,
                           out_ref, o_scratch, *, n_heads):
    # Blocks: q_ref (1, block_l, d_model), k_ref/v_ref (1, S, d_model).
    # Weights arrive pre-transposed to (in, out) and pre-cast to bf16; the
    # softmax scale is already folded into Wq / bq by the wrapper.
    xq = q_ref[0].astype(jnp.bfloat16)   # (Lb, d_model)
    xk = k_ref[0].astype(jnp.bfloat16)   # (S,  d_model)
    xv = v_ref[0].astype(jnp.bfloat16)   # (S,  d_model)

    # Q/K/V projections: bf16 x bf16 -> f32 accumulation on the MXU.
    q = jnp.dot(xq, wq_ref[...], preferred_element_type=jnp.float32) + bq_ref[0]
    k = jnp.dot(xk, wk_ref[...], preferred_element_type=jnp.float32) + bk_ref[0]
    v = jnp.dot(xv, wv_ref[...], preferred_element_type=jnp.float32) + bv_ref[0]

    H = n_heads
    E = q.shape[1] // H          # d_keys
    Dv = v.shape[1] // H         # d_values

    qb = q.astype(jnp.bfloat16)
    kb = k.astype(jnp.bfloat16)
    vb = v.astype(jnp.bfloat16)

    # Per-head scaled dot-product attention.  PyTorch's view(B, L, H, -1)
    # means head h occupies contiguous columns [h*E, (h+1)*E), so static
    # column slices match einsum('blhe,bshe->bhls') exactly.  Each head's
    # output is written to lane-contiguous columns of a VMEM scratch.
    for h in range(H):
        qh = qb[:, h * E:(h + 1) * E]           # (Lb, E)
        kh = kb[:, h * E:(h + 1) * E]           # (S,  E)
        vh = vb[:, h * Dv:(h + 1) * Dv]         # (S,  Dv)
        # contract on the last dim of both operands -> no explicit kh.T copy
        s = lax.dot_general(qh, kh, (((1,), (1,)), ((), ())),
                            preferred_element_type=jnp.float32)       # (Lb, S)
        s = s - jnp.max(s, axis=-1, keepdims=True)
        p = jnp.exp(s)
        a = p * pl.reciprocal(jnp.sum(p, axis=-1, keepdims=True), approx=True)
        o_scratch[:, h * Dv:(h + 1) * Dv] = jnp.dot(
            a.astype(jnp.bfloat16), vh, preferred_element_type=jnp.float32)

    # Output projection from the scratch (no concatenate relayout).
    y = jnp.dot(o_scratch[...].astype(jnp.bfloat16), wo_ref[...],
                preferred_element_type=jnp.float32) + bo_ref[0]
    out_ref[0] = y.astype(out_ref.dtype)


def attention_layer(queries, keys, values, params, n_heads, *, block_l=None):
    """Returns (out, att) matching AttentionLayer.forward (att is None)."""
    wq, bq, wk, bk, wv, bv, wo, bo = params
    B, L, d_model = queries.shape
    _, S, _ = keys.shape
    dqk = wq.shape[0]   # d_keys * n_heads
    dv = wv.shape[0]    # d_values * n_heads
    E = dqk // n_heads
    scale = 1.0 / math.sqrt(E)

    # Host-side (XLA) prep:
    #  - fold the softmax scale into the Q projection,
    #  - pre-transpose weights to (in, out) so the kernel never transposes,
    #  - cast matmul operands to bf16 (f32 accumulation inside the kernel).
    wq_t = (wq.astype(jnp.float32) * scale).T.astype(jnp.bfloat16)  # (d_model, dqk)
    wk_t = wk.T.astype(jnp.bfloat16)                                 # (d_model, dqk)
    wv_t = wv.T.astype(jnp.bfloat16)                                 # (d_model, dv)
    wo_t = wo.T.astype(jnp.bfloat16)                                 # (dv, d_model)
    bq2 = (bq.astype(jnp.float32) * scale).reshape(1, -1)
    bk2 = bk.astype(jnp.float32).reshape(1, -1)
    bv2 = bv.astype(jnp.float32).reshape(1, -1)
    bo2 = bo.astype(jnp.float32).reshape(1, -1)

    # Sequence tiling: feeds both TensorCores on v7x and bounds VMEM for
    # long L; for best perf pick L, d_model multiples of (8, 128).
    if block_l is None:
        block_l = min(L, 512)
    grid = (B, pl.cdiv(L, block_l))

    kernel = functools.partial(attention_layer_kernel, n_heads=n_heads)

    out = pl.pallas_call(
        kernel,
        out_shape=jax.ShapeDtypeStruct((B, L, d_model), queries.dtype),
        grid=grid,
        in_specs=[
            pl.BlockSpec((1, block_l, d_model), lambda b, l: (b, l, 0)),  # queries
            pl.BlockSpec((1, S, d_model), lambda b, l: (b, 0, 0)),        # keys
            pl.BlockSpec((1, S, d_model), lambda b, l: (b, 0, 0)),        # values
            # Weight/bias index_maps are constant -> resident across the grid.
            pl.BlockSpec((d_model, dqk), lambda b, l: (0, 0)),            # Wq^T (scaled)
            pl.BlockSpec((1, dqk), lambda b, l: (0, 0)),                  # bq (scaled)
            pl.BlockSpec((d_model, dqk), lambda b, l: (0, 0)),            # Wk^T
            pl.BlockSpec((1, dqk), lambda b, l: (0, 0)),                  # bk
            pl.BlockSpec((d_model, dv), lambda b, l: (0, 0)),             # Wv^T
            pl.BlockSpec((1, dv), lambda b, l: (0, 0)),                   # bv
            pl.BlockSpec((dv, d_model), lambda b, l: (0, 0)),             # Wo^T
            pl.BlockSpec((1, d_model), lambda b, l: (0, 0)),              # bo
        ],
        out_specs=pl.BlockSpec((1, block_l, d_model), lambda b, l: (b, l, 0)),
        scratch_shapes=[pltpu.VMEM((block_l, dv), jnp.float32)],
        compiler_params=pltpu.CompilerParams(
            dimension_semantics=("parallel", "parallel"),
            vmem_limit_bytes=32 * 1024 * 1024),
    )(queries, keys, values, wq_t, bq2, wk_t, bk2, wv_t, bv2, wo_t, bo2)

    return out, None  # output_attention=False -> att is None


def reference(queries, keys, values, params, n_heads):
    """Pure-JAX (f32) reference mirroring the PyTorch forward pass."""
    wq, bq, wk, bk, wv, bv, wo, bo = params
    B, L, _ = queries.shape
    _, S, _ = keys.shape
    H = n_heads
    q = queries @ wq.T + bq
    k = keys @ wk.T + bk
    v = values @ wv.T + bv
    E = q.shape[-1] // H
    Dv = v.shape[-1] // H
    q = q.reshape(B, L, H, E)
    k = k.reshape(B, S, H, E)
    v = v.reshape(B, S, H, Dv)
    scores = jnp.einsum('blhe,bshe->bhls', q, k)
    A = jax.nn.softmax(scores / math.sqrt(E), axis=-1)
    out = jnp.einsum('bhls,bshd->blhd', A, v).reshape(B, L, -1)
    return out @ wo.T + bo


def init_params(key, d_model, n_heads):
    d_keys = d_model // n_heads
    d_values = d_model // n_heads
    ks = jax.random.split(key, 8)
    std = 0.05
    wq = std * jax.random.normal(ks[0], (d_keys * n_heads, d_model), jnp.float32)
    bq = std * jax.random.normal(ks[1], (d_keys * n_heads,), jnp.float32)
    wk = std * jax.random.normal(ks[2], (d_keys * n_heads, d_model), jnp.float32)
    bk = std * jax.random.normal(ks[3], (d_keys * n_heads,), jnp.float32)
    wv = std * jax.random.normal(ks[4], (d_values * n_heads, d_model), jnp.float32)
    bv = std * jax.random.normal(ks[5], (d_values * n_heads,), jnp.float32)
    wo = std * jax.random.normal(ks[6], (d_model, d_values * n_heads), jnp.float32)
    bo = std * jax.random.normal(ks[7], (d_model,), jnp.float32)
    return (wq, bq, wk, bk, wv, bv, wo, bo)


if __name__ == "__main__":
    B, L, S, d_model, n_heads = 2, 8, 8, 32, 4

    key = jax.random.PRNGKey(0)
    k_q, k_k, k_v, k_p = jax.random.split(key, 4)
    queries = jax.random.normal(k_q, (B, L, d_model), jnp.float32)
    keys = jax.random.normal(k_k, (B, S, d_model), jnp.float32)
    values = jax.random.normal(k_v, (B, S, d_model), jnp.float32)
    params = init_params(k_p, d_model, n_heads)

    out, att = attention_layer(queries, keys, values, params, n_heads)
    out = jax.block_until_ready(out)

    ref = reference(queries, keys, values, params, n_heads)
    assert out.shape == (B, L, d_model)
    assert att is None
    # bf16 MXU operands + approx reciprocal -> looser tolerance than pure f32.
    max_err = float(jnp.max(jnp.abs(out - ref)))
    assert jnp.allclose(out, ref, atol=2e-2, rtol=2e-2), f"mismatch vs reference (max abs err {max_err})"

    print("KERNEL_OK")
</pallas_src>

<mosaic_0001>
module attributes {stable_mosaic.version = 11 : i64} {
  func.func @attention_layer_kernel(%arg0: i32, %arg1: i32, %arg2: memref<1x8x32xf32, #tpu.memory_space<vmem>>, %arg3: memref<1x8x32xf32, #tpu.memory_space<vmem>>, %arg4: memref<1x8x32xf32, #tpu.memory_space<vmem>>, %arg5: memref<32x32xbf16, #tpu.memory_space<vmem>>, %arg6: memref<1x32xf32, #tpu.memory_space<vmem>>, %arg7: memref<32x32xbf16, #tpu.memory_space<vmem>>, %arg8: memref<1x32xf32, #tpu.memory_space<vmem>>, %arg9: memref<32x32xbf16, #tpu.memory_space<vmem>>, %arg10: memref<1x32xf32, #tpu.memory_space<vmem>>, %arg11: memref<32x32xbf16, #tpu.memory_space<vmem>>, %arg12: memref<1x32xf32, #tpu.memory_space<vmem>>, %arg13: memref<1x8x32xf32, #tpu.memory_space<vmem>>, %arg14: memref<8x32xf32, #tpu.memory_space<vmem>>) attributes {dimension_semantics = [#tpu.dimension_semantics<parallel>, #tpu.dimension_semantics<parallel>], iteration_bounds = array<i64: 2, 1>, scalar_prefetch = 0 : i64, scratch_operands = 1 : i64, tpu.core_type = #tpu.core_type<tc>, window_params = [{transform_indices = @transform_0, window_bounds = array<i64: 1, 8, 32>}, {transform_indices = @transform_1, window_bounds = array<i64: 1, 8, 32>}, {transform_indices = @transform_2, window_bounds = array<i64: 1, 8, 32>}, {pipeline_mode = #tpu.pipeline_mode<synchronous>, transform_indices = @transform_3, window_bounds = array<i64: 32, 32>}, {pipeline_mode = #tpu.pipeline_mode<synchronous>, transform_indices = @transform_4, window_bounds = array<i64: 1, 32>}, {pipeline_mode = #tpu.pipeline_mode<synchronous>, transform_indices = @transform_5, window_bounds = array<i64: 32, 32>}, {pipeline_mode = #tpu.pipeline_mode<synchronous>, transform_indices = @transform_6, window_bounds = array<i64: 1, 32>}, {pipeline_mode = #tpu.pipeline_mode<synchronous>, transform_indices = @transform_7, window_bounds = array<i64: 32, 32>}, {pipeline_mode = #tpu.pipeline_mode<synchronous>, transform_indices = @transform_8, window_bounds = array<i64: 1, 32>}, {pipeline_mode = #tpu.pipeline_mode<synchronous>, transform_indices = @transform_9, window_bounds = array<i64: 32, 32>}, {pipeline_mode = #tpu.pipeline_mode<synchronous>, transform_indices = @transform_10, window_bounds = array<i64: 1, 32>}, {transform_indices = @transform_11, window_bounds = array<i64: 1, 8, 32>}]} {
    %c0 = arith.constant 0 : index
    %c0_0 = arith.constant 0 : index
    %c0_1 = arith.constant 0 : index
    %0 = vector.load %arg2[%c0, %c0_0, %c0_1] : memref<1x8x32xf32, #tpu.memory_space<vmem>>, vector<1x8x32xf32>
    %1 = vector.shape_cast %0 : vector<1x8x32xf32> to vector<8x32xf32>
    %2 = arith.truncf %1 : vector<8x32xf32> to vector<8x32xbf16>
    %c0_2 = arith.constant 0 : index
    %c0_3 = arith.constant 0 : index
    %c0_4 = arith.constant 0 : index
    %3 = vector.load %arg3[%c0_2, %c0_3, %c0_4] : memref<1x8x32xf32, #tpu.memory_space<vmem>>, vector<1x8x32xf32>
    %4 = vector.shape_cast %3 : vector<1x8x32xf32> to vector<8x32xf32>
    %5 = arith.truncf %4 : vector<8x32xf32> to vector<8x32xbf16>
    %c0_5 = arith.constant 0 : index
    %c0_6 = arith.constant 0 : index
    %c0_7 = arith.constant 0 : index
    %6 = vector.load %arg4[%c0_5, %c0_6, %c0_7] : memref<1x8x32xf32, #tpu.memory_space<vmem>>, vector<1x8x32xf32>
    %7 = vector.shape_cast %6 : vector<1x8x32xf32> to vector<8x32xf32>
    %8 = arith.truncf %7 : vector<8x32xf32> to vector<8x32xbf16>
    %c0_8 = arith.constant 0 : index
    %c0_9 = arith.constant 0 : index
    %9 = vector.load %arg5[%c0_8, %c0_9] : memref<32x32xbf16, #tpu.memory_space<vmem>>, vector<32x32xbf16>
    %cst = arith.constant dense<0.000000e+00> : vector<8x32xf32>
    %10 = tpu.matmul %2, %9, %cst {dimension_numbers = #tpu.dot_dimension_numbers<[1], [0], [0], [1], [0, 0, 1, 1], [], []>} : vector<8x32xbf16>, vector<32x32xbf16>, vector<8x32xf32> -> vector<8x32xf32>
    %c0_10 = arith.constant 0 : index
    %c0_11 = arith.constant 0 : index
    %11 = vector.load %arg6[%c0_10, %c0_11] : memref<1x32xf32, #tpu.memory_space<vmem>>, vector<1x32xf32>
    %12 = vector.shape_cast %11 : vector<1x32xf32> to vector<32xf32>
    %13 = vector.shape_cast %12 : vector<32xf32> to vector<1x32xf32>
    %14 = vector.broadcast %13 : vector<1x32xf32> to vector<8x32xf32>
    %15 = arith.addf %10, %14 : vector<8x32xf32>
    %c0_12 = arith.constant 0 : index
    %c0_13 = arith.constant 0 : index
    %16 = vector.load %arg7[%c0_12, %c0_13] : memref<32x32xbf16, #tpu.memory_space<vmem>>, vector<32x32xbf16>
    %cst_14 = arith.constant dense<0.000000e+00> : vector<8x32xf32>
    %17 = tpu.matmul %5, %16, %cst_14 {dimension_numbers = #tpu.dot_dimension_numbers<[1], [0], [0], [1], [0, 0, 1, 1], [], []>} : vector<8x32xbf16>, vector<32x32xbf16>, vector<8x32xf32> -> vector<8x32xf32>
    %c0_15 = arith.constant 0 : index
    %c0_16 = arith.constant 0 : index
    %18 = vector.load %arg8[%c0_15, %c0_16] : memref<1x32xf32, #tpu.memory_space<vmem>>, vector<1x32xf32>
    %19 = vector.shape_cast %18 : vector<1x32xf32> to vector<32xf32>
    %20 = vector.shape_cast %19 : vector<32xf32> to vector<1x32xf32>
    %21 = vector.broadcast %20 : vector<1x32xf32> to vector<8x32xf32>
    %22 = arith.addf %17, %21 : vector<8x32xf32>
    %c0_17 = arith.constant 0 : index
    %c0_18 = arith.constant 0 : index
    %23 = vector.load %arg9[%c0_17, %c0_18] : memref<32x32xbf16, #tpu.memory_space<vmem>>, vector<32x32xbf16>
    %cst_19 = arith.constant dense<0.000000e+00> : vector<8x32xf32>
    %24 = tpu.matmul %8, %23, %cst_19 {dimension_numbers = #tpu.dot_dimension_numbers<[1], [0], [0], [1], [0, 0, 1, 1], [], []>} : vector<8x32xbf16>, vector<32x32xbf16>, vector<8x32xf32> -> vector<8x32xf32>
    %c0_20 = arith.constant 0 : index
    %c0_21 = arith.constant 0 : index
    %25 = vector.load %arg10[%c0_20, %c0_21] : memref<1x32xf32, #tpu.memory_space<vmem>>, vector<1x32xf32>
    %26 = vector.shape_cast %25 : vector<1x32xf32> to vector<32xf32>
    %27 = vector.shape_cast %26 : vector<32xf32> to vector<1x32xf32>
    %28 = vector.broadcast %27 : vector<1x32xf32> to vector<8x32xf32>
    %29 = arith.addf %24, %28 : vector<8x32xf32>
    %30 = arith.truncf %15 : vector<8x32xf32> to vector<8x32xbf16>
    %31 = arith.truncf %22 : vector<8x32xf32> to vector<8x32xbf16>
    %32 = arith.truncf %29 : vector<8x32xf32> to vector<8x32xbf16>
    %33 = vector.extract_strided_slice %30 {offsets = [0, 0], sizes = [8, 8], strides = [1, 1]} : vector<8x32xbf16> to vector<8x8xbf16>
    %34 = vector.extract_strided_slice %31 {offsets = [0, 0], sizes = [8, 8], strides = [1, 1]} : vector<8x32xbf16> to vector<8x8xbf16>
    %35 = vector.extract_strided_slice %32 {offsets = [0, 0], sizes = [8, 8], strides = [1, 1]} : vector<8x32xbf16> to vector<8x8xbf16>
    %cst_22 = arith.constant dense<0.000000e+00> : vector<8x8xf32>
    %36 = tpu.matmul %33, %34, %cst_22 {dimension_numbers = #tpu.dot_dimension_numbers<[1], [1], [0], [0], [0, 0, 1, 0], [], []>} : vector<8x8xbf16>, vector<8x8xbf16>, vector<8x8xf32> -> vector<8x8xf32>
    %cst_23 = arith.constant dense<0xFF800000> : vector<8xf32>
    %37 = vector.multi_reduction <maximumf>, %36, %cst_23 [1] : vector<8x8xf32> to vector<8xf32>
    %38 = vector.shape_cast %37 : vector<8xf32> to vector<8x1xf32>
    %39 = vector.broadcast %38 : vector<8x1xf32> to vector<8x8xf32>
    %40 = arith.subf %36, %39 : vector<8x8xf32>
    %41 = math.exp %40 : vector<8x8xf32>
    %cst_24 = arith.constant dense<0.000000e+00> : vector<8xf32>
    %42 = vector.multi_reduction <add>, %41, %cst_24 [1] : vector<8x8xf32> to vector<8xf32>
    %43 = vector.shape_cast %42 : vector<8xf32> to vector<8x1xf32>
    %44 = tpu.reciprocal %43 {approx = true} : vector<8x1xf32> -> vector<8x1xf32>
    %45 = vector.broadcast %44 : vector<8x1xf32> to vector<8x8xf32>
    %46 = arith.mulf %41, %45 : vector<8x8xf32>
    %47 = arith.truncf %46 : vector<8x8xf32> to vector<8x8xbf16>
    %cst_25 = arith.constant dense<0.000000e+00> : vector<8x8xf32>
    %48 = tpu.matmul %47, %35, %cst_25 {dimension_numbers = #tpu.dot_dimension_numbers<[1], [0], [0], [1], [0, 0, 1, 1], [], []>} : vector<8x8xbf16>, vector<8x8xbf16>, vector<8x8xf32> -> vector<8x8xf32>
    %c0_26 = arith.constant 0 : index
    %c0_27 = arith.constant 0 : index
    %49 = vector.load %arg14[%c0_26, %c0_27] : memref<8x32xf32, #tpu.memory_space<vmem>>, vector<8x8xf32>
    tpu.vector_store %arg14[%c0_26, %c0_27], %48 {strides = array<i32>} : memref<8x32xf32, #tpu.memory_space<vmem>>, vector<8x8xf32>,
    %50 = vector.extract_strided_slice %30 {offsets = [0, 8], sizes = [8, 8], strides = [1, 1]} : vector<8x32xbf16> to vector<8x8xbf16>
    %51 = vector.extract_strided_slice %31 {offsets = [0, 8], sizes = [8, 8], strides = [1, 1]} : vector<8x32xbf16> to vector<8x8xbf16>
    %52 = vector.extract_strided_slice %32 {offsets = [0, 8], sizes = [8, 8], strides = [1, 1]} : vector<8x32xbf16> to vector<8x8xbf16>
    %cst_28 = arith.constant dense<0.000000e+00> : vector<8x8xf32>
    %53 = tpu.matmul %50, %51, %cst_28 {dimension_numbers = #tpu.dot_dimension_numbers<[1], [1], [0], [0], [0, 0, 1, 0], [], []>} : vector<8x8xbf16>, vector<8x8xbf16>, vector<8x8xf32> -> vector<8x8xf32>
    %cst_29 = arith.constant dense<0xFF800000> : vector<8xf32>
    %54 = vector.multi_reduction <maximumf>, %53, %cst_29 [1] : vector<8x8xf32> to vector<8xf32>
    %55 = vector.shape_cast %54 : vector<8xf32> to vector<8x1xf32>
    %56 = vector.broadcast %55 : vector<8x1xf32> to vector<8x8xf32>
    %57 = arith.subf %53, %56 : vector<8x8xf32>
    %58 = math.exp %57 : vector<8x8xf32>
    %cst_30 = arith.constant dense<0.000000e+00> : vector<8xf32>
    %59 = vector.multi_reduction <add>, %58, %cst_30 [1] : vector<8x8xf32> to vector<8xf32>
    %60 = vector.shape_cast %59 : vector<8xf32> to vector<8x1xf32>
    %61 = tpu.reciprocal %60 {approx = true} : vector<8x1xf32> -> vector<8x1xf32>
    %62 = vector.broadcast %61 : vector<8x1xf32> to vector<8x8xf32>
    %63 = arith.mulf %58, %62 : vector<8x8xf32>
    %64 = arith.truncf %63 : vector<8x8xf32> to vector<8x8xbf16>
    %cst_31 = arith.constant dense<0.000000e+00> : vector<8x8xf32>
    %65 = tpu.matmul %64, %52, %cst_31 {dimension_numbers = #tpu.dot_dimension_numbers<[1], [0], [0], [1], [0, 0, 1, 1], [], []>} : vector<8x8xbf16>, vector<8x8xbf16>, vector<8x8xf32> -> vector<8x8xf32>
    %c0_32 = arith.constant 0 : index
    %c8 = arith.constant 8 : index
    %66 = vector.load %arg14[%c0_32, %c8] : memref<8x32xf32, #tpu.memory_space<vmem>>, vector<8x8xf32>
    tpu.vector_store %arg14[%c0_32, %c8], %65 {strides = array<i32>} : memref<8x32xf32, #tpu.memory_space<vmem>>, vector<8x8xf32>,
    %67 = vector.extract_strided_slice %30 {offsets = [0, 16], sizes = [8, 8], strides = [1, 1]} : vector<8x32xbf16> to vector<8x8xbf16>
    %68 = vector.extract_strided_slice %31 {offsets = [0, 16], sizes = [8, 8], strides = [1, 1]} : vector<8x32xbf16> to vector<8x8xbf16>
    %69 = vector.extract_strided_slice %32 {offsets = [0, 16], sizes = [8, 8], strides = [1, 1]} : vector<8x32xbf16> to vector<8x8xbf16>
    %cst_33 = arith.constant dense<0.000000e+00> : vector<8x8xf32>
    %70 = tpu.matmul %67, %68, %cst_33 {dimension_numbers = #tpu.dot_dimension_numbers<[1], [1], [0], [0], [0, 0, 1, 0], [], []>} : vector<8x8xbf16>, vector<8x8xbf16>, vector<8x8xf32> -> vector<8x8xf32>
    %cst_34 = arith.constant dense<0xFF800000> : vector<8xf32>
    %71 = vector.multi_reduction <maximumf>, %70, %cst_34 [1] : vector<8x8xf32> to vector<8xf32>
    %72 = vector.shape_cast %71 : vector<8xf32> to vector<8x1xf32>
    %73 = vector.broadcast %72 : vector<8x1xf32> to vector<8x8xf32>
    %74 = arith.subf %70, %73 : vector<8x8xf32>
    %75 = math.exp %74 : vector<8x8xf32>
    %cst_35 = arith.constant dense<0.000000e+00> : vector<8xf32>
    %76 = vector.multi_reduction <add>, %75, %cst_35 [1] : vector<8x8xf32> to vector<8xf32>
    %77 = vector.shape_cast %76 : vector<8xf32> to vector<8x1xf32>
    %78 = tpu.reciprocal %77 {approx = true} : vector<8x1xf32> -> vector<8x1xf32>
    %79 = vector.broadcast %78 : vector<8x1xf32> to vector<8x8xf32>
    %80 = arith.mulf %75, %79 : vector<8x8xf32>
    %81 = arith.truncf %80 : vector<8x8xf32> to vector<8x8xbf16>
    %cst_36 = arith.constant dense<0.000000e+00> : vector<8x8xf32>
    %82 = tpu.matmul %81, %69, %cst_36 {dimension_numbers = #tpu.dot_dimension_numbers<[1], [0], [0], [1], [0, 0, 1, 1], [], []>} : vector<8x8xbf16>, vector<8x8xbf16>, vector<8x8xf32> -> vector<8x8xf32>
    %c0_37 = arith.constant 0 : index
    %c16 = arith.constant 16 : index
    %83 = vector.load %arg14[%c0_37, %c16] : memref<8x32xf32, #tpu.memory_space<vmem>>, vector<8x8xf32>
    tpu.vector_store %arg14[%c0_37, %c16], %82 {strides = array<i32>} : memref<8x32xf32, #tpu.memory_space<vmem>>, vector<8x8xf32>,
    %84 = vector.extract_strided_slice %30 {offsets = [0, 24], sizes = [8, 8], strides = [1, 1]} : vector<8x32xbf16> to vector<8x8xbf16>
    %85 = vector.extract_strided_slice %31 {offsets = [0, 24], sizes = [8, 8], strides = [1, 1]} : vector<8x32xbf16> to vector<8x8xbf16>
    %86 = vector.extract_strided_slice %32 {offsets = [0, 24], sizes = [8, 8], strides = [1, 1]} : vector<8x32xbf16> to vector<8x8xbf16>
    %cst_38 = arith.constant dense<0.000000e+00> : vector<8x8xf32>
    %87 = tpu.matmul %84, %85, %cst_38 {dimension_numbers = #tpu.dot_dimension_numbers<[1], [1], [0], [0], [0, 0, 1, 0], [], []>} : vector<8x8xbf16>, vector<8x8xbf16>, vector<8x8xf32> -> vector<8x8xf32>
    %cst_39 = arith.constant dense<0xFF800000> : vector<8xf32>
    %88 = vector.multi_reduction <maximumf>, %87, %cst_39 [1] : vector<8x8xf32> to vector<8xf32>
    %89 = vector.shape_cast %88 : vector<8xf32> to vector<8x1xf32>
    %90 = vector.broadcast %89 : vector<8x1xf32> to vector<8x8xf32>
    %91 = arith.subf %87, %90 : vector<8x8xf32>
    %92 = math.exp %91 : vector<8x8xf32>
    %cst_40 = arith.constant dense<0.000000e+00> : vector<8xf32>
    %93 = vector.multi_reduction <add>, %92, %cst_40 [1] : vector<8x8xf32> to vector<8xf32>
    %94 = vector.shape_cast %93 : vector<8xf32> to vector<8x1xf32>
    %95 = tpu.reciprocal %94 {approx = true} : vector<8x1xf32> -> vector<8x1xf32>
    %96 = vector.broadcast %95 : vector<8x1xf32> to vector<8x8xf32>
    %97 = arith.mulf %92, %96 : vector<8x8xf32>
    %98 = arith.truncf %97 : vector<8x8xf32> to vector<8x8xbf16>
    %cst_41 = arith.constant dense<0.000000e+00> : vector<8x8xf32>
    %99 = tpu.matmul %98, %86, %cst_41 {dimension_numbers = #tpu.dot_dimension_numbers<[1], [0], [0], [1], [0, 0, 1, 1], [], []>} : vector<8x8xbf16>, vector<8x8xbf16>, vector<8x8xf32> -> vector<8x8xf32>
    %c0_42 = arith.constant 0 : index
    %c24 = arith.constant 24 : index
    %100 = vector.load %arg14[%c0_42, %c24] : memref<8x32xf32, #tpu.memory_space<vmem>>, vector<8x8xf32>
    tpu.vector_store %arg14[%c0_42, %c24], %99 {strides = array<i32>} : memref<8x32xf32, #tpu.memory_space<vmem>>, vector<8x8xf32>,
    %c0_43 = arith.constant 0 : index
    %c0_44 = arith.constant 0 : index
    %101 = vector.load %arg14[%c0_43, %c0_44] : memref<8x32xf32, #tpu.memory_space<vmem>>, vector<8x32xf32>
    %102 = arith.truncf %101 : vector<8x32xf32> to vector<8x32xbf16>
    %c0_45 = arith.constant 0 : index
    %c0_46 = arith.constant 0 : index
    %103 = vector.load %arg11[%c0_45, %c0_46] : memref<32x32xbf16, #tpu.memory_space<vmem>>, vector<32x32xbf16>
    %cst_47 = arith.constant dense<0.000000e+00> : vector<8x32xf32>
    %104 = tpu.matmul %102, %103, %cst_47 {dimension_numbers = #tpu.dot_dimension_numbers<[1], [0], [0], [1], [0, 0, 1, 1], [], []>} : vector<8x32xbf16>, vector<32x32xbf16>, vector<8x32xf32> -> vector<8x32xf32>
    %c0_48 = arith.constant 0 : index
    %c0_49 = arith.constant 0 : index
    %105 = vector.load %arg12[%c0_48, %c0_49] : memref<1x32xf32, #tpu.memory_space<vmem>>, vector<1x32xf32>
    %106 = vector.shape_cast %105 : vector<1x32xf32> to vector<32xf32>
    %107 = vector.shape_cast %106 : vector<32xf32> to vector<1x32xf32>
    %108 = vector.broadcast %107 : vector<1x32xf32> to vector<8x32xf32>
    %109 = arith.addf %104, %108 : vector<8x32xf32>
    %c0_50 = arith.constant 0 : index
    %c0_51 = arith.constant 0 : index
    %c0_52 = arith.constant 0 : index
    %110 = vector.load %arg13[%c0_50, %c0_51, %c0_52] : memref<1x8x32xf32, #tpu.memory_space<vmem>>, vector<1x8x32xf32>
    %111 = vector.shape_cast %110 : vector<1x8x32xf32> to vector<8x32xf32>
    %112 = vector.shape_cast %109 : vector<8x32xf32> to vector<1x8x32xf32>
    tpu.vector_store %arg13[%c0_50, %c0_51, %c0_52], %112 {strides = array<i32>} : memref<1x8x32xf32, #tpu.memory_space<vmem>>, vector<1x8x32xf32>,
    return
  }
  func.func @transform_0(%arg0: i32, %arg1: i32) -> (i32, i32, i32) {
    %c0_i32 = arith.constant 0 : i32
    %c0_i32_0 = arith.constant 0 : i32
    return %arg0, %arg1, %c0_i32 : i32, i32, i32
  }
  func.func @transform_1(%arg0: i32, %arg1: i32) -> (i32, i32, i32) {
    %c0_i32 = arith.constant 0 : i32
    %c0_i32_0 = arith.constant 0 : i32
    %c0_i32_1 = arith.constant 0 : i32
    return %arg0, %c0_i32, %c0_i32_0 : i32, i32, i32
  }
  func.func @transform_2(%arg0: i32, %arg1: i32) -> (i32, i32, i32) {
    %c0_i32 = arith.constant 0 : i32
    %c0_i32_0 = arith.constant 0 : i32
    %c0_i32_1 = arith.constant 0 : i32
    return %arg0, %c0_i32, %c0_i32_0 : i32, i32, i32
  }
  func.func @transform_3(%arg0: i32, %arg1: i32) -> (i32, i32) {
    %c0_i32 = arith.constant 0 : i32
    %c0_i32_0 = arith.constant 0 : i32
    %c0_i32_1 = arith.constant 0 : i32
    return %c0_i32, %c0_i32_0 : i32, i32
  }
  func.func @transform_4(%arg0: i32, %arg1: i32) -> (i32, i32) {
    %c0_i32 = arith.constant 0 : i32
    %c0_i32_0 = arith.constant 0 : i32
    %c0_i32_1 = arith.constant 0 : i32
    return %c0_i32, %c0_i32_0 : i32, i32
  }
  func.func @transform_5(%arg0: i32, %arg1: i32) -> (i32, i32) {
    %c0_i32 = arith.constant 0 : i32
    %c0_i32_0 = arith.constant 0 : i32
    %c0_i32_1 = arith.constant 0 : i32
    return %c0_i32, %c0_i32_0 : i32, i32
  }
  func.func @transform_6(%arg0: i32, %arg1: i32) -> (i32, i32) {
    %c0_i32 = arith.constant 0 : i32
    %c0_i32_0 = arith.constant 0 : i32
    %c0_i32_1 = arith.constant 0 : i32
    return %c0_i32, %c0_i32_0 : i32, i32
  }
  func.func @transform_7(%arg0: i32, %arg1: i32) -> (i32, i32) {
    %c0_i32 = arith.constant 0 : i32
    %c0_i32_0 = arith.constant 0 : i32
    %c0_i32_1 = arith.constant 0 : i32
    return %c0_i32, %c0_i32_0 : i32, i32
  }
  func.func @transform_8(%arg0: i32, %arg1: i32) -> (i32, i32) {
    %c0_i32 = arith.constant 0 : i32
    %c0_i32_0 = arith.constant 0 : i32
    %c0_i32_1 = arith.constant 0 : i32
    return %c0_i32, %c0_i32_0 : i32, i32
  }
  func.func @transform_9(%arg0: i32, %arg1: i32) -> (i32, i32) {
    %c0_i32 = arith.constant 0 : i32
    %c0_i32_0 = arith.constant 0 : i32
    %c0_i32_1 = arith.constant 0 : i32
    return %c0_i32, %c0_i32_0 : i32, i32
  }
  func.func @transform_10(%arg0: i32, %arg1: i32) -> (i32, i32) {
    %c0_i32 = arith.constant 0 : i32
    %c0_i32_0 = arith.constant 0 : i32
    %c0_i32_1 = arith.constant 0 : i32
    return %c0_i32, %c0_i32_0 : i32, i32
  }
  func.func @transform_11(%arg0: i32, %arg1: i32) -> (i32, i32, i32) {
    %c0_i32 = arith.constant 0 : i32
    %c0_i32_0 = arith.constant 0 : i32
    return %arg0, %arg1, %c0_i32 : i32, i32, i32
  }
}

</mosaic_0001>

<llo_original>
// kernel: tpu_custom_call.1
$region0: #{tpu_custom_call.1}
  #allocation0 [shape = 'u32[]', space=smem, size = 0x4, offset = 0x4, fixed_abs, tag = 'smem constant byte address 0x4 - core index']
  #allocation1 [shape = 'u32[72,128]{1,0:T(1,128)}', space=vmem, size = 0x9000, scoped, tag = 'internal scratch']
  #allocation2 [shape = 'f32[8,32]{1,0:T(8,128)}', space=vmem, size = 0x1000, scoped, tag = 'scratch operand']
  %s0 = inlined_call_operand.hbm [shape: f32[2,8,32], index: 0, kind: input, shape index: {}]
  %s1 = inlined_call_operand.hbm [shape: f32[2,8,32], index: 1, kind: input, shape index: {}]
  %s2 = inlined_call_operand.hbm [shape: f32[2,8,32], index: 2, kind: input, shape index: {}]
  %s3 = inlined_call_operand.hbm [shape: bf16[32,32], index: 3, kind: input, shape index: {}]
  %s4 = inlined_call_operand.vmem [shape: f32[1,32], index: 4, kind: input, shape index: {}]
  %s5 = inlined_call_operand.hbm [shape: bf16[32,32], index: 5, kind: input, shape index: {}]
  %s6 = inlined_call_operand.vmem [shape: f32[1,32], index: 6, kind: input, shape index: {}]
  %s7 = inlined_call_operand.hbm [shape: bf16[32,32], index: 7, kind: input, shape index: {}]
  %s8 = inlined_call_operand.vmem [shape: f32[1,32], index: 8, kind: input, shape index: {}]
  %s9 = inlined_call_operand.hbm [shape: bf16[32,32], index: 9, kind: input, shape index: {}]
  %s10 = inlined_call_operand.vmem [shape: f32[1,32], index: 10, kind: input, shape index: {}]
  %s11 = inlined_call_operand.hbm [shape: f32[2,8,32], index: 11, kind: output, shape index: {}]
  %s12 = sld [smem:[#allocation0]]
  $region105: #{tpu_custom_call.1} parent=0
    _
  %s14 = ssub.s32 1, %s12
  %s15 = scalar_select 0, %s14, %s12
  $region1: #{tpu_custom_call.1} parent=0
    #allocation3 [shape = 'u8[8192]{0}', space=vmem, size = 0x2000, scoped, tag = 'input window, operand 0']
    #allocation4 [shape = 's32[2]{0}', space=sflag, size = 0x8, scoped, tag = 'scoped memory for tpu_custom_call.1']
    #allocation5 [shape = 's32[2]{0}', space=sflag, size = 0x8, scoped, tag = 'scoped memory for tpu_custom_call.1']
    #allocation6 [shape = 'u8[8192]{0}', space=vmem, size = 0x2000, scoped, tag = 'input window, operand 1']
    #allocation7 [shape = 's32[2]{0}', space=sflag, size = 0x8, scoped, tag = 'scoped memory for tpu_custom_call.1']
    #allocation8 [shape = 'u8[8192]{0}', space=vmem, size = 0x2000, scoped, tag = 'input window, operand 2']
    #allocation9 [shape = 'u8[8192]{0}', space=vmem, size = 0x2000, scoped, tag = 'input window, operand 3, single buffered']
    #allocation10 [shape = 's32[1]{0}', space=sflag, size = 0x4, scoped, tag = 'scoped memory for tpu_custom_call.1']
    #allocation11 [shape = 'u8[8192]{0}', space=vmem, size = 0x2000, scoped, tag = 'input window, operand 5, single buffered']
    #allocation12 [shape = 'u8[8192]{0}', space=vmem, size = 0x2000, scoped, tag = 'input window, operand 7, single buffered']
    #allocation13 [shape = 's32[1]{0}', space=sflag, size = 0x4, scoped, tag = 'scoped memory for tpu_custom_call.1']
    #allocation14 [shape = 'u8[8192]{0}', space=vmem, size = 0x2000, scoped, tag = 'input window, operand 9, single buffered']
    #allocation15 [shape = 'u8[8192]{0}', space=vmem, size = 0x2000, scoped, tag = 'output window, operand 0']
    %16 = vsyncpa [#allocation4], 0
    %s17 = scalar_lea.sflag [#allocation4], 1
    %18 = vsyncpa %s17, 0
    %19 = vsyncpa [#allocation7], 0
    %s20 = scalar_lea.sflag [#allocation7], 1
    %21 = vsyncpa %s20, 0
    %22 = vsyncpa [#allocation10], 0
    %23 = vsyncpa [#allocation13], 0
    %24 = vsyncpa [#allocation5], 0
    %s25 = scalar_lea.sflag [#allocation5], 1
    %26 = vsyncpa %s25, 0
    loop: start=0, step=1, limit=4
    $region2: #{tpu_custom_call.1} parent=1 // loop_pre_header
      _
    $region3: #{tpu_custom_call.1} parent=1 // loop_header
      %s28 = sphi 0, %s32
      %p29 = scmp.ge.s32.totalorder %s28, 4
      %s35 = sphi 0, %s47
      %s36 = sphi 0, %s43
      %s37 = sphi 0, %s35
      %s38 = sphi 0, %s36
      %s39 = sphi 0, %s37
      %s40 = sphi 0, %s38
      %s52 = sphi 0, %s54
      %s55 = sphi 0, %s52
      %s56 = sphi 0, %s55
      %s72 = sphi 0, %s56
      %s78 = sphi 0, %s80
      %s81 = sphi 0, %s78
      %s82 = sphi 0, %s81
      %s98 = sphi 0, %s82
      %s104 = sphi 0, %s106
      %s107 = sphi 0, %s104
      %s108 = sphi 0, %s107
      %s124 = sphi 0, %s108
      %s128 = sphi 0, %s128
      %s130 = sphi 0, %s128
      %s131 = sphi 0, %s130
      %s145 = sphi 0, %s131
      %s149 = sphi 0, %s149
      %s151 = sphi 0, %s149
      %s152 = sphi 0, %s151
      %s166 = sphi 0, %s152
      %s170 = sphi 0, %s170
      %s172 = sphi 0, %s170
      %s173 = sphi 0, %s172
      %s187 = sphi 0, %s173
      %s191 = sphi 0, %s191
      %s193 = sphi 0, %s191
      %s194 = sphi 0, %s193
      %s208 = sphi 0, %s194
      %s212 = sphi 0, %s212
      %s214 = sphi 0, %s212
      %s215 = sphi 0, %s214
      %s229 = sphi 0, %s215
      %s233 = sphi 0, %s233
      %s235 = sphi 0, %s233
      %s236 = sphi 0, %s235
      %s250 = sphi 0, %s236
      %s254 = sphi 0, %s254
      %s256 = sphi 0, %s254
      %s257 = sphi 0, %s256
      %s271 = sphi 0, %s257
      %s275 = sphi 0, %s275
      %s277 = sphi 0, %s275
      %s278 = sphi 0, %s277
      %s292 = sphi 0, %s278
      %s300 = sphi 0, %s302
      %s303 = sphi 0, %s300
      %s304 = sphi 0, %s303
      %s320 = sphi 0, %s304
    $region4: #{tpu_custom_call.1} parent=1 // loop_header_branch
      %31 = sbr.rel (%p29) target = $region8
    $region5: #{tpu_custom_call.1} parent=1 // loop_body
      %s33 = ssub.s32 %s28, 1
      %s34 = ssub.s32 %s28, 2
      %s41 = sadd.s32 1, %s36
      %p42 = scmp.ge.s32.totalorder %s41, 1
      %s43 = scalar_select %p42, 0, %s41
      %s44 = sadd.s32 1, %s35
      %s45 = scalar_select %p42, %s44, %s35
      %p46 = scmp.ge.s32.totalorder %s45, 2
      %s47 = scalar_select %p46, 0, %s45
      %s48 = ssub.s32 %s35, %s47
      %s49 = ssub.s32 %s36, %s43
      %s50 = sor.u32 %s48, %s49
      %p51 = scmp.eq.s32.totalorder %s50, 0
      %s53 = sadd.s32 %s52, 1
      %s54 = scalar_select %p51, %s52, %s53
      %p57 = pneg %p51
      %p58 = scmp.eq.s32.totalorder %s28, 1
      %p59 = por %p57, %p58
      %p60 = scmp.ne.s32.totalorder %s52, %s55
      %p61 = scmp.eq.s32.totalorder %s28, 0
      %p62 = por %p60, %p61
      %p63 = scmp.ne.s32.totalorder %s52, %s55
      %p64 = scmp.eq.s32.totalorder %s33, 1
      %p65 = por %p63, %p64
      %p66 = scmp.ne.s32.totalorder %s55, %s56
      %p67 = scmp.eq.s32.totalorder %s33, 0
      %p68 = por %p66, %p67
      %p69 = scmp.ne.s32.totalorder %s55, %s56
      %p70 = scmp.eq.s32.totalorder %s34, 1
      %p71 = por %p69, %p70
      %p73 = scmp.ne.s32.totalorder %s56, %s72
      %p74 = scmp.eq.s32.totalorder %s34, 0
      %p75 = por %p73, %p74
      %s76 = ssub.s32 %s35, %s47
      %p77 = scmp.eq.s32.totalorder %s76, 0
      %s79 = sadd.s32 %s78, 1
      %s80 = scalar_select %p77, %s78, %s79
      %p83 = pneg %p77
      %p84 = scmp.eq.s32.totalorder %s28, 1
      %p85 = por %p83, %p84
      %p86 = scmp.ne.s32.totalorder %s78, %s81
      %p87 = scmp.eq.s32.totalorder %s28, 0
      %p88 = por %p86, %p87
      %p89 = scmp.ne.s32.totalorder %s78, %s81
      %p90 = scmp.eq.s32.totalorder %s33, 1
      %p91 = por %p89, %p90
      %p92 = scmp.ne.s32.totalorder %s81, %s82
      %p93 = scmp.eq.s32.totalorder %s33, 0
      %p94 = por %p92, %p93
      %p95 = scmp.ne.s32.totalorder %s81, %s82
      %p96 = scmp.eq.s32.totalorder %s34, 1
      %p97 = por %p95, %p96
      %p99 = scmp.ne.s32.totalorder %s82, %s98
      %p100 = scmp.eq.s32.totalorder %s34, 0
      %p101 = por %p99, %p100
      %s102 = ssub.s32 %s35, %s47
      %p103 = scmp.eq.s32.totalorder %s102, 0
      %s105 = sadd.s32 %s104, 1
      %s106 = scalar_select %p103, %s104, %s105
      %p109 = pneg %p103
      %p110 = scmp.eq.s32.totalorder %s28, 1
      %p111 = por %p109, %p110
      %p112 = scmp.ne.s32.totalorder %s104, %s107
      %p113 = scmp.eq.s32.totalorder %s28, 0
      %p114 = por %p112, %p113
      %p115 = scmp.ne.s32.totalorder %s104, %s107
      %p116 = scmp.eq.s32.totalorder %s33, 1
      %p117 = por %p115, %p116
      %p118 = scmp.ne.s32.totalorder %s107, %s108
      %p119 = scmp.eq.s32.totalorder %s33, 0
      %p120 = por %p118, %p119
      %p121 = scmp.ne.s32.totalorder %s107, %s108
      %p122 = scmp.eq.s32.totalorder %s34, 1
      %p123 = por %p121, %p122
      %p125 = scmp.ne.s32.totalorder %s108, %s124
      %p126 = scmp.eq.s32.totalorder %s34, 0
      %p127 = por %p125, %p126
      %s129 = sadd.s32 %s128, 1
      %p132 = scmp.eq.s32.totalorder %s28, 1
      %p133 = scmp.ne.s32.totalorder %s128, %s130
      %p134 = scmp.eq.s32.totalorder %s28, 0
      %p135 = por %p133, %p134
      %p136 = scmp.ne.s32.totalorder %s128, %s130
      %p137 = scmp.eq.s32.totalorder %s33, 1
      %p138 = por %p136, %p137
      %p139 = scmp.ne.s32.totalorder %s130, %s131
      %p140 = scmp.eq.s32.totalorder %s33, 0
      %p141 = por %p139, %p140
      %p142 = scmp.ne.s32.totalorder %s130, %s131
      %p143 = scmp.eq.s32.totalorder %s34, 1
      %p144 = por %p142, %p143
      %p146 = scmp.ne.s32.totalorder %s131, %s145
      %p147 = scmp.eq.s32.totalorder %s34, 0
      %p148 = por %p146, %p147
      %s150 = sadd.s32 %s149, 1
      %p153 = scmp.eq.s32.totalorder %s28, 1
      %p154 = scmp.ne.s32.totalorder %s149, %s151
      %p155 = scmp.eq.s32.totalorder %s28, 0
      %p156 = por %p154, %p155
      %p157 = scmp.ne.s32.totalorder %s149, %s151
      %p158 = scmp.eq.s32.totalorder %s33, 1
      %p159 = por %p157, %p158
      %p160 = scmp.ne.s32.totalorder %s151, %s152
      %p161 = scmp.eq.s32.totalorder %s33, 0
      %p162 = por %p160, %p161
      %p163 = scmp.ne.s32.totalorder %s151, %s152
      %p164 = scmp.eq.s32.totalorder %s34, 1
      %p165 = por %p163, %p164
      %p167 = scmp.ne.s32.totalorder %s152, %s166
      %p168 = scmp.eq.s32.totalorder %s34, 0
      %p169 = por %p167, %p168
      %s171 = sadd.s32 %s170, 1
      %p174 = scmp.eq.s32.totalorder %s28, 1
      %p175 = scmp.ne.s32.totalorder %s170, %s172
      %p176 = scmp.eq.s32.totalorder %s28, 0
      %p177 = por %p175, %p176
      %p178 = scmp.ne.s32.totalorder %s170, %s172
      %p179 = scmp.eq.s32.totalorder %s33, 1
      %p180 = por %p178, %p179
      %p181 = scmp.ne.s32.totalorder %s172, %s173
      %p182 = scmp.eq.s32.totalorder %s33, 0
      %p183 = por %p181, %p182
      %p184 = scmp.ne.s32.totalorder %s172, %s173
      %p185 = scmp.eq.s32.totalorder %s34, 1
      %p186 = por %p184, %p185
      %p188 = scmp.ne.s32.totalorder %s173, %s187
      %p189 = scmp.eq.s32.totalorder %s34, 0
      %p190 = por %p188, %p189
      %s192 = sadd.s32 %s191, 1
      %p195 = scmp.eq.s32.totalorder %s28, 1
      %p196 = scmp.ne.s32.totalorder %s191, %s193
      %p197 = scmp.eq.s32.totalorder %s28, 0
      %p198 = por %p196, %p197
      %p199 = scmp.ne.s32.totalorder %s191, %s193
      %p200 = scmp.eq.s32.totalorder %s33, 1
      %p201 = por %p199, %p200
      %p202 = scmp.ne.s32.totalorder %s193, %s194
      %p203 = scmp.eq.s32.totalorder %s33, 0
      %p204 = por %p202, %p203
      %p205 = scmp.ne.s32.totalorder %s193, %s194
      %p206 = scmp.eq.s32.totalorder %s34, 1
      %p207 = por %p205, %p206
      %p209 = scmp.ne.s32.totalorder %s194, %s208
      %p210 = scmp.eq.s32.totalorder %s34, 0
      %p211 = por %p209, %p210
      %s213 = sadd.s32 %s212, 1
      %p216 = scmp.eq.s32.totalorder %s28, 1
      %p217 = scmp.ne.s32.totalorder %s212, %s214
      %p218 = scmp.eq.s32.totalorder %s28, 0
      %p219 = por %p217, %p218
      %p220 = scmp.ne.s32.totalorder %s212, %s214
      %p221 = scmp.eq.s32.totalorder %s33, 1
      %p222 = por %p220, %p221
      %p223 = scmp.ne.s32.totalorder %s214, %s215
      %p224 = scmp.eq.s32.totalorder %s33, 0
      %p225 = por %p223, %p224
      %p226 = scmp.ne.s32.totalorder %s214, %s215
      %p227 = scmp.eq.s32.totalorder %s34, 1
      %p228 = por %p226, %p227
      %p230 = scmp.ne.s32.totalorder %s215, %s229
      %p231 = scmp.eq.s32.totalorder %s34, 0
      %p232 = por %p230, %p231
      %s234 = sadd.s32 %s233, 1
      %p237 = scmp.eq.s32.totalorder %s28, 1
      %p238 = scmp.ne.s32.totalorder %s233, %s235
      %p239 = scmp.eq.s32.totalorder %s28, 0
      %p240 = por %p238, %p239
      %p241 = scmp.ne.s32.totalorder %s233, %s235
      %p242 = scmp.eq.s32.totalorder %s33, 1
      %p243 = por %p241, %p242
      %p244 = scmp.ne.s32.totalorder %s235, %s236
      %p245 = scmp.eq.s32.totalorder %s33, 0
      %p246 = por %p244, %p245
      %p247 = scmp.ne.s32.totalorder %s235, %s236
      %p248 = scmp.eq.s32.totalorder %s34, 1
      %p249 = por %p247, %p248
      %p251 = scmp.ne.s32.totalorder %s236, %s250
      %p252 = scmp.eq.s32.totalorder %s34, 0
      %p253 = por %p251, %p252
      %s255 = sadd.s32 %s254, 1
      %p258 = scmp.eq.s32.totalorder %s28, 1
      %p259 = scmp.ne.s32.totalorder %s254, %s256
      %p260 = scmp.eq.s32.totalorder %s28, 0
      %p261 = por %p259, %p260
      %p262 = scmp.ne.s32.totalorder %s254, %s256
      %p263 = scmp.eq.s32.totalorder %s33, 1
      %p264 = por %p262, %p263
      %p265 = scmp.ne.s32.totalorder %s256, %s257
      %p266 = scmp.eq.s32.totalorder %s33, 0
      %p267 = por %p265, %p266
      %p268 = scmp.ne.s32.totalorder %s256, %s257
      %p269 = scmp.eq.s32.totalorder %s34, 1
      %p270 = por %p268, %p269
      %p272 = scmp.ne.s32.totalorder %s257, %s271
      %p273 = scmp.eq.s32.totalorder %s34, 0
      %p274 = por %p272, %p273
      %s276 = sadd.s32 %s275, 1
      %p279 = scmp.eq.s32.totalorder %s28, 1
      %p280 = scmp.ne.s32.totalorder %s275, %s277
      %p281 = scmp.eq.s32.totalorder %s28, 0
      %p282 = por %p280, %p281
      %p283 = scmp.ne.s32.totalorder %s275, %s277
      %p284 = scmp.eq.s32.totalorder %s33, 1
      %p285 = por %p283, %p284
      %p286 = scmp.ne.s32.totalorder %s277, %s278
      %p287 = scmp.eq.s32.totalorder %s33, 0
      %p288 = por %p286, %p287
      %p289 = scmp.ne.s32.totalorder %s277, %s278
      %p290 = scmp.eq.s32.totalorder %s34, 1
      %p291 = por %p289, %p290
      %p293 = scmp.ne.s32.totalorder %s278, %s292
      %p294 = scmp.eq.s32.totalorder %s34, 0
      %p295 = por %p293, %p294
      %s296 = ssub.s32 %s35, %s47
      %s297 = ssub.s32 %s36, %s43
      %s298 = sor.u32 %s296, %s297
      %p299 = scmp.eq.s32.totalorder %s298, 0
      %s301 = sadd.s32 %s300, 1
      %s302 = scalar_select %p299, %s300, %s301
      %p305 = pneg %p299
      %p306 = scmp.eq.s32.totalorder %s28, 1
      %p307 = por %p305, %p306
      %p308 = scmp.ne.s32.totalorder %s300, %s303
      %p309 = scmp.eq.s32.totalorder %s28, 0
      %p310 = por %p308, %p309
      %p311 = scmp.ne.s32.totalorder %s300, %s303
      %p312 = scmp.eq.s32.totalorder %s33, 1
      %p313 = por %p311, %p312
      %p314 = scmp.ne.s32.totalorder %s303, %s304
      %p315 = scmp.eq.s32.totalorder %s33, 0
      %p316 = por %p314, %p315
      %p317 = scmp.ne.s32.totalorder %s303, %s304
      %p318 = scmp.eq.s32.totalorder %s34, 1
      %p319 = por %p317, %p318
      %p321 = scmp.ne.s32.totalorder %s304, %s320
      %p322 = scmp.eq.s32.totalorder %s34, 0
      %p323 = por %p321, %p322
      %p324 = scmp.le.s32.totalorder 1, %s28
      %p325 = scmp.lt.s32.totalorder %s28, 3
      %p326 = pnand %p324, %p325
      %p327 = pneg %p326
      // Predicated region
      $region9: #{tpu_custom_call.1} parent=5 // pred_check
        _
      $region10: #{tpu_custom_call.1} parent=5 // pred_check_branch
        %329 = sbr.rel (%p326) target = $region12
      $region11: #{tpu_custom_call.1} parent=5 // pred_region
        %s330 = ssub.s32 %s28, 1
        // Predicated region
        $region13: #{tpu_custom_call.1} parent=11 // pred_check
          %p331 = pneg %p141
        $region14: #{tpu_custom_call.1} parent=11 // pred_check_branch
          %333 = sbr.rel (%p331) target = $region16
        $region15: #{tpu_custom_call.1} parent=11 // pred_region
          %335 = vsyncadd [#allocation10], 0
          %s336 = sshll.u32 %s3, 4
          %s337 = int_to_ptr.hbm [resolvable:$true] %s336
          %s338 = sshll.u32 [#allocation9], 4
          %s339 = int_to_ptr.vmem [resolvable:$true] %s338
          %344 = dma.hbm_to_vmem [thread:$0]  %s337, 256, %s339, [#allocation10], 64, 64, 4
        $region16: #{tpu_custom_call.1} parent=11 // pred_fallthru
          _
        // Predicated region
        $region17: #{tpu_custom_call.1} parent=11 // pred_check
          %p345 = pneg %p162
        $region18: #{tpu_custom_call.1} parent=11 // pred_check_branch
          %347 = sbr.rel (%p345) target = $region20
        $region19: #{tpu_custom_call.1} parent=11 // pred_region
          _
        $region20: #{tpu_custom_call.1} parent=11 // pred_fallthru
          _
        // Predicated region
        $region21: #{tpu_custom_call.1} parent=11 // pred_check
          %p348 = pneg %p183
        $region22: #{tpu_custom_call.1} parent=11 // pred_check_branch
          %350 = sbr.rel (%p348) target = $region24
        $region23: #{tpu_custom_call.1} parent=11 // pred_region
          %352 = vsyncadd [#allocation10], 0
          %s353 = sshll.u32 %s5, 4
          %s354 = int_to_ptr.hbm [resolvable:$true] %s353
          %s355 = sshll.u32 [#allocation11], 4
          %s356 = int_to_ptr.vmem [resolvable:$true] %s355
          %361 = dma.hbm_to_vmem [thread:$0]  %s354, 256, %s356, [#allocation10], 64, 64, 4
        $region24: #{tpu_custom_call.1} parent=11 // pred_fallthru
          _
        // Predicated region
        $region25: #{tpu_custom_call.1} parent=11 // pred_check
          %p362 = pneg %p204
        $region26: #{tpu_custom_call.1} parent=11 // pred_check_branch
          %364 = sbr.rel (%p362) target = $region28
        $region27: #{tpu_custom_call.1} parent=11 // pred_region
          _
        $region28: #{tpu_custom_call.1} parent=11 // pred_fallthru
          _
        // Predicated region
        $region29: #{tpu_custom_call.1} parent=11 // pred_check
          %p365 = pneg %p225
        $region30: #{tpu_custom_call.1} parent=11 // pred_check_branch
          %367 = sbr.rel (%p365) target = $region32
        $region31: #{tpu_custom_call.1} parent=11 // pred_region
          %369 = vsyncadd [#allocation13], 0
          %s370 = sshll.u32 %s7, 4
          %s371 = int_to_ptr.hbm [resolvable:$true] %s370
          %s372 = sshll.u32 [#allocation12], 4
          %s373 = int_to_ptr.vmem [resolvable:$true] %s372
          %378 = dma.hbm_to_vmem [thread:$0]  %s371, 256, %s373, [#allocation13], 64, 64, 4
        $region32: #{tpu_custom_call.1} parent=11 // pred_fallthru
          _
        // Predicated region
        $region33: #{tpu_custom_call.1} parent=11 // pred_check
          %p379 = pneg %p246
        $region34: #{tpu_custom_call.1} parent=11 // pred_check_branch
          %381 = sbr.rel (%p379) target = $region36
        $region35: #{tpu_custom_call.1} parent=11 // pred_region
          _
        $region36: #{tpu_custom_call.1} parent=11 // pred_fallthru
          _
        // Predicated region
        $region37: #{tpu_custom_call.1} parent=11 // pred_check
          %p382 = pneg %p267
        $region38: #{tpu_custom_call.1} parent=11 // pred_check_branch
          %384 = sbr.rel (%p382) target = $region40
        $region39: #{tpu_custom_call.1} parent=11 // pred_region
          %386 = vsyncadd [#allocation13], 0
          %s387 = sshll.u32 %s9, 4
          %s388 = int_to_ptr.hbm [resolvable:$true] %s387
          %s389 = sshll.u32 [#allocation14], 4
          %s390 = int_to_ptr.vmem [resolvable:$true] %s389
          %395 = dma.hbm_to_vmem [thread:$0]  %s388, 256, %s390, [#allocation13], 64, 64, 4
        $region40: #{tpu_custom_call.1} parent=11 // pred_fallthru
          _
        // Predicated region
        $region41: #{tpu_custom_call.1} parent=11 // pred_check
          %p396 = pneg %p288
        $region42: #{tpu_custom_call.1} parent=11 // pred_check_branch
          %398 = sbr.rel (%p396) target = $region44
        $region43: #{tpu_custom_call.1} parent=11 // pred_region
          _
        $region44: #{tpu_custom_call.1} parent=11 // pred_fallthru
          _
      $region12: #{tpu_custom_call.1} parent=5 // pred_fallthru
        _
      %p399 = scmp.lt.s32.totalorder %s28, 2
      // Predicated region
      $region45: #{tpu_custom_call.1} parent=5 // pred_check
        %p400 = pneg %p399
      $region46: #{tpu_custom_call.1} parent=5 // pred_check_branch
        %402 = sbr.rel (%p400) target = $region48
      $region47: #{tpu_custom_call.1} parent=5 // pred_region
        // Predicated region
        $region49: #{tpu_custom_call.1} parent=47 // pred_check
          %p403 = pneg %p62
        $region50: #{tpu_custom_call.1} parent=47 // pred_check_branch
          %405 = sbr.rel (%p403) target = $region52
        $region51: #{tpu_custom_call.1} parent=47 // pred_region
          %s406 = sand.u32 %s52, 1
          %s407 = scalar_lea.sflag [#allocation4], %s406
          %s408 = sand.u32 %s52, 1
          %s409 = smul.addr %s408, 8
          %s410 = scalar_lea.vmem [#allocation3], %s409
          %412 = vsyncadd %s407, 0
          %s413 = sadd.s32 %s36, %s35
          %s414 = smul.addr %s413, 8
          %s415 = scalar_lea.hbm %s0, %s414
          %s417 = sshll.u32 %s415, 4
          %s418 = int_to_ptr.hbm [resolvable:$true] %s417
          %s419 = sshll.u32 %s410, 4
          %s420 = int_to_ptr.vmem [resolvable:$true] %s419
          %422 = dma.hbm_to_vmem [thread:$0]  %s418, 128, %s420, %s407
        $region52: #{tpu_custom_call.1} parent=47 // pred_fallthru
          _
        // Predicated region
        $region53: #{tpu_custom_call.1} parent=47 // pred_check
          %p423 = pneg %p88
        $region54: #{tpu_custom_call.1} parent=47 // pred_check_branch
          %425 = sbr.rel (%p423) target = $region56
        $region55: #{tpu_custom_call.1} parent=47 // pred_region
          %s426 = sand.u32 %s28, 1
          %s427 = scalar_lea.sflag [#allocation7], %s426
          %s428 = sand.u32 %s78, 1
          %s429 = smul.addr %s428, 8
          %s430 = scalar_lea.vmem [#allocation6], %s429
          %432 = vsyncadd %s427, 0
          %s433 = smul.addr %s35, 8
          %s434 = scalar_lea.hbm %s1, %s433
          %s436 = sshll.u32 %s434, 4
          %s437 = int_to_ptr.hbm [resolvable:$true] %s436
          %s438 = sshll.u32 %s430, 4
          %s439 = int_to_ptr.vmem [resolvable:$true] %s438
          %441 = dma.hbm_to_vmem [thread:$0]  %s437, 128, %s439, %s427
        $region56: #{tpu_custom_call.1} parent=47 // pred_fallthru
          _
        // Predicated region
        $region57: #{tpu_custom_call.1} parent=47 // pred_check
          %p442 = pneg %p114
        $region58: #{tpu_custom_call.1} parent=47 // pred_check_branch
          %444 = sbr.rel (%p442) target = $region60
        $region59: #{tpu_custom_call.1} parent=47 // pred_region
          %s445 = sand.u32 %s28, 1
          %s446 = scalar_lea.sflag [#allocation7], %s445
          %s447 = sand.u32 %s104, 1
          %s448 = smul.addr %s447, 8
          %s449 = scalar_lea.vmem [#allocation8], %s448
          %451 = vsyncadd %s446, 0
          %s452 = smul.addr %s35, 8
          %s453 = scalar_lea.hbm %s2, %s452
          %s455 = sshll.u32 %s453, 4
          %s456 = int_to_ptr.hbm [resolvable:$true] %s455
          %s457 = sshll.u32 %s449, 4
          %s458 = int_to_ptr.vmem [resolvable:$true] %s457
          %460 = dma.hbm_to_vmem [thread:$0]  %s456, 128, %s458, %s446
        $region60: #{tpu_custom_call.1} parent=47 // pred_fallthru
          _
      $region48: #{tpu_custom_call.1} parent=5 // pred_fallthru
        _
      %p461 = scmp.le.s32.totalorder 1, %s28
      %p462 = scmp.lt.s32.totalorder %s28, 3
      %p463 = pnand %p461, %p462
      %p464 = pneg %p463
      // Predicated region
      $region61: #{tpu_custom_call.1} parent=5 // pred_check
        _
      $region62: #{tpu_custom_call.1} parent=5 // pred_check_branch
        %466 = sbr.rel (%p463) target = $region64
      $region63: #{tpu_custom_call.1} parent=5 // pred_region
        %s467 = ssub.s32 %s28, 1
        %s468 = sand.u32 %s55, 1
        %s469 = scalar_lea.sflag [#allocation4], %s468
        %s470 = sand.u32 %s55, 1
        %s471 = smul.addr %s470, 8
        %s472 = scalar_lea.vmem [#allocation3], %s471
        // Predicated region
        $region65: #{tpu_custom_call.1} parent=63 // pred_check
          %p473 = pneg %p68
        $region66: #{tpu_custom_call.1} parent=63 // pred_check_branch
          %475 = sbr.rel (%p473) target = $region68
        $region67: #{tpu_custom_call.1} parent=63 // pred_region
          %477 = dma.done %s469, 128
        $region68: #{tpu_custom_call.1} parent=63 // pred_fallthru
          _
        %s478 = sand.u32 %s33, 1
        %s479 = scalar_lea.sflag [#allocation7], %s478
        %s480 = sand.u32 %s81, 1
        %s481 = smul.addr %s480, 8
        %s482 = scalar_lea.vmem [#allocation6], %s481
        // Predicated region
        $region69: #{tpu_custom_call.1} parent=63 // pred_check
          %p483 = pneg %p94
        $region70: #{tpu_custom_call.1} parent=63 // pred_check_branch
          %485 = sbr.rel (%p483) target = $region72
        $region71: #{tpu_custom_call.1} parent=63 // pred_region
          %487 = dma.done %s479, 128
        $region72: #{tpu_custom_call.1} parent=63 // pred_fallthru
          _
        %s488 = sand.u32 %s33, 1
        %s489 = scalar_lea.sflag [#allocation7], %s488
        %s490 = sand.u32 %s107, 1
        %s491 = smul.addr %s490, 8
        %s492 = scalar_lea.vmem [#allocation8], %s491
        // Predicated region
        $region73: #{tpu_custom_call.1} parent=63 // pred_check
          %p493 = pneg %p120
        $region74: #{tpu_custom_call.1} parent=63 // pred_check_branch
          %495 = sbr.rel (%p493) target = $region76
        $region75: #{tpu_custom_call.1} parent=63 // pred_region
          %497 = dma.done %s489, 128
        $region76: #{tpu_custom_call.1} parent=63 // pred_fallthru
          _
        // Predicated region
        $region77: #{tpu_custom_call.1} parent=63 // pred_check
          %p498 = pneg %p141
        $region78: #{tpu_custom_call.1} parent=63 // pred_check_branch
          %500 = sbr.rel (%p498) target = $region80
        $region79: #{tpu_custom_call.1} parent=63 // pred_region
          %502 = dma.done [#allocation10], 256
        $region80: #{tpu_custom_call.1} parent=63 // pred_fallthru
          _
        // Predicated region
        $region81: #{tpu_custom_call.1} parent=63 // pred_check
          %p503 = pneg %p183
        $region82: #{tpu_custom_call.1} parent=63 // pred_check_branch
          %505 = sbr.rel (%p503) target = $region84
        $region83: #{tpu_custom_call.1} parent=63 // pred_region
          %507 = dma.done [#allocation10], 256
        $region84: #{tpu_custom_call.1} parent=63 // pred_fallthru
          _
        // Predicated region
        $region85: #{tpu_custom_call.1} parent=63 // pred_check
          %p508 = pneg %p225
        $region86: #{tpu_custom_call.1} parent=63 // pred_check_branch
          %510 = sbr.rel (%p508) target = $region88
        $region87: #{tpu_custom_call.1} parent=63 // pred_region
          %512 = dma.done [#allocation13], 256
        $region88: #{tpu_custom_call.1} parent=63 // pred_fallthru
          _
        // Predicated region
        $region89: #{tpu_custom_call.1} parent=63 // pred_check
          %p513 = pneg %p267
        $region90: #{tpu_custom_call.1} parent=63 // pred_check_branch
          %515 = sbr.rel (%p513) target = $region92
        $region91: #{tpu_custom_call.1} parent=63 // pred_region
          %517 = dma.done [#allocation13], 256
        $region92: #{tpu_custom_call.1} parent=63 // pred_fallthru
          _
        %s518 = sand.u32 %s55, 1
        %s519 = scalar_lea.sflag [#allocation4], %s518
        %s520 = sand.u32 %s55, 1
        %s521 = smul.addr %s520, 8
        %s522 = scalar_lea.vmem [#allocation3], %s521
        %p523 = pneg %p68
        %p524 = pneg %p65
        %s525 = sand.u32 %s33, 1
        %s526 = scalar_lea.sflag [#allocation7], %s525
        %s527 = sand.u32 %s81, 1
        %s528 = smul.addr %s527, 8
        %s529 = scalar_lea.vmem [#allocation6], %s528
        %p530 = pneg %p94
        %p531 = pneg %p91
        %s532 = sand.u32 %s33, 1
        %s533 = scalar_lea.sflag [#allocation7], %s532
        %s534 = sand.u32 %s107, 1
        %s535 = smul.addr %s534, 8
        %s536 = scalar_lea.vmem [#allocation8], %s535
        %p537 = pneg %p120
        %p538 = pneg %p117
        %p539 = pneg %p141
        %p540 = pneg %p138
        %p541 = pneg %p162
        %p542 = pneg %p159
        %p543 = pneg %p183
        %p544 = pneg %p180
        %p545 = pneg %p204
        %p546 = pneg %p201
        %p547 = pneg %p225
        %p548 = pneg %p222
        %p549 = pneg %p246
        %p550 = pneg %p243
        %p551 = pneg %p267
        %p552 = pneg %p264
        %p553 = pneg %p288
        %p554 = pneg %p285
        %p555 = pneg %p316
        %p556 = pneg %p313
        %s557 = sand.u32 %s303, 1
        %s558 = scalar_lea.sflag [#allocation5], %s557
        %s559 = sand.u32 %s303, 1
        %s560 = smul.addr %s559, 8
        %s561 = scalar_lea.vmem [#allocation15], %s560
        %v563 = vld [vmem:[%s472] sm:$0xff]
        %v564 = vpack.c.bf16 %v563, %v563
        %v565 = vld [vmem:[%s482] sm:$0xff]
        %v566 = vpack.c.bf16 %v565, %v565
        %v567 = vld [vmem:[%s492] sm:$0xff]
        %v568 = vpack.c.bf16 %v567, %v567
        %v569 = vld [vmem:[#allocation9] sm:$0xf]
        %v570 = vld [vmem:[#allocation9 + $0x4] sm:$0xf]
        %v571 = vld [vmem:[#allocation9 + $0x8] sm:$0xf]
        %v572 = vld [vmem:[#allocation9 + $0xc] sm:$0xf]
        %v573 = vld [vmem:[%s4] sm:$0x1]
        %v575 = vperm.slane %v573, 0
        %v581 = vunpack.c.l.b16 %v569
        %v582 = vunpack.c.l.b16 %v570
        %v583 = vunpack.c.l.b16 %v571
        %v584 = vunpack.c.l.b16 %v572
        %v585 = vpack.c.b16 %v582, %v581
        %v586 = vpack.c.b16 %v584, %v583
        %vm589 = vcmask 261120
        %v591 = vsel %vm589, %v564, 0
        %593 = vmatpush.bf16.msra.mxu0 0
        %594 = vmatpush.bf16.msra.mxu0 0
        %595 = vmatpush.bf16.msra.mxu0 0
        %596 = vmatpush.bf16.msra.mxu0 0
        %597 = vmatpush.bf16.msra.mxu0 0
        %598 = vmatpush.bf16.msra.mxu0 0
        %599 = vmatpush.bf16.msra.mxu0 %v586
        %600 = vmatpush.bf16.msra.mxu0 %v585
        %601 = vmatmul.bf16.gmra.mxu0 %v591
        %v602 = vpop.f32.mrf.mxu0
        %v603 = vadd.f32 %v575, %v602
        %v604 = vpop.f32.mrf.mxu0
        %605 = vdwg.mxu0
        %v606 = vld [vmem:[#allocation11] sm:$0xf]
        %v607 = vld [vmem:[#allocation11 + $0x4] sm:$0xf]
        %v608 = vld [vmem:[#allocation11 + $0x8] sm:$0xf]
        %v609 = vld [vmem:[#allocation11 + $0xc] sm:$0xf]
        %v610 = vld [vmem:[%s6] sm:$0x1]
        %v612 = vperm.slane %v610, 0
        %v618 = vunpack.c.l.b16 %v606
        %v619 = vunpack.c.l.b16 %v607
        %v620 = vunpack.c.l.b16 %v608
        %v621 = vunpack.c.l.b16 %v609
        %v622 = vpack.c.b16 %v619, %v618
        %v623 = vpack.c.b16 %v621, %v620
        %v627 = vsel %vm589, %v566, 0
        %629 = vmatpush.bf16.msra.mxu0 0
        %630 = vmatpush.bf16.msra.mxu0 0
        %631 = vmatpush.bf16.msra.mxu0 0
        %632 = vmatpush.bf16.msra.mxu0 0
        %633 = vmatpush.bf16.msra.mxu0 0
        %634 = vmatpush.bf16.msra.mxu0 0
        %635 = vmatpush.bf16.msra.mxu0 %v623
        %636 = vmatpush.bf16.msra.mxu0 %v622
        %637 = vmatmul.bf16.gmra.mxu0 %v627
        %v638 = vpop.f32.mrf.mxu0
        %v639 = vadd.f32 %v612, %v638
        %v640 = vpop.f32.mrf.mxu0
        %641 = vdwg.mxu0
        %v642 = vld [vmem:[#allocation12] sm:$0xf]
        %v643 = vld [vmem:[#allocation12 + $0x4] sm:$0xf]
        %v644 = vld [vmem:[#allocation12 + $0x8] sm:$0xf]
        %v645 = vld [vmem:[#allocation12 + $0xc] sm:$0xf]
        %v646 = vld [vmem:[%s8] sm:$0x1]
        %v648 = vperm.slane %v646, 0
        %v654 = vunpack.c.l.b16 %v642
        %v655 = vunpack.c.l.b16 %v643
        %v656 = vunpack.c.l.b16 %v644
        %v657 = vunpack.c.l.b16 %v645
        %v658 = vpack.c.b16 %v655, %v654
        %v659 = vpack.c.b16 %v657, %v656
        %v663 = vsel %vm589, %v568, 0
        %665 = vmatpush.bf16.msra.mxu0 0
        %666 = vmatpush.bf16.msra.mxu0 0
        %667 = vmatpush.bf16.msra.mxu0 0
        %668 = vmatpush.bf16.msra.mxu0 0
        %669 = vmatpush.bf16.msra.mxu0 0
        %670 = vmatpush.bf16.msra.mxu0 0
        %671 = vmatpush.bf16.msra.mxu0 %v659
        %672 = vmatpush.bf16.msra.mxu0 %v658
        %673 = vmatmul.bf16.gmra.mxu0 %v663
        %v674 = vpop.f32.mrf.mxu0
        %v675 = vadd.f32 %v648, %v674
        %v676 = vpop.f32.mrf.mxu0
        %677 = vdwg.mxu0
        %v678 = vpack.c.bf16 %v603, %v603
        %v679 = vpack.c.bf16 %v639, %v639
        %v680 = vpack.c.bf16 %v675, %v675
        %vm681 = vcmask 64512
        %v683 = vsel %vm681, %v678, 0
        %v686 = vsel %vm681, %v679, 0
        %688 = vmatpush.bf16.xpose.msra.mxu0 0
        %689 = vmatpush.bf16.xpose.msra.mxu0 0
        %690 = vmatpush.bf16.xpose.msra.mxu0 0
        %691 = vmatpush.bf16.xpose.msra.mxu0 0
        %692 = vmatpush.bf16.xpose.msra.mxu0 0
        %693 = vmatpush.bf16.xpose.msra.mxu0 0
        %694 = vmatpush.bf16.xpose.msra.mxu0 0
        %695 = vmatpush.bf16.xpose.msra.mxu0 %v686
        %696 = vmatmul.bf16.gmra.mxu0 %v683
        %v697 = vpop.f32.mrf.mxu0
        %v698 = vadd.f32 0.0, %v697
        %v699 = vpop.f32.mrf.mxu0
        %700 = vdwg.mxu0
        %v701 = vsel %vm681, %v698, -inf
        %702 = vmax.xlane.f32.xlu0 %v701
        %v703 = vpop.xlane.xlu0 %702
        %v704 = vsub.f32 %v698, %v703
        %v705 = vmul.f32 %v704, 1.442695
        %v706 = vpow.pop %v705
        %v707 = vsel %vm681, %v706, 0.0
        %708 = vadd.xlane.f32.xlu0 %v707
        %v709 = vpop.xlane.xlu0 %708
        %v710 = vrcp.pop %v709
        %v711 = vmul.f32 %v706, %v710
        %v712 = vpack.c.bf16 %v711, %v711
        %v714 = vsel %vm681, %v712, 0
        %vm716 = vcmask 1043456
        %v718 = vsel %vm716, %v680, 0
        %720 = vmatpush.bf16.msra.mxu0 0
        %721 = vmatpush.bf16.msra.mxu0 0
        %722 = vmatpush.bf16.msra.mxu0 0
        %723 = vmatpush.bf16.msra.mxu0 0
        %724 = vmatpush.bf16.msra.mxu0 0
        %725 = vmatpush.bf16.msra.mxu0 0
        %726 = vmatpush.bf16.msra.mxu0 0
        %727 = vmatpush.bf16.msra.mxu0 %v718
        %728 = vmatmul.bf16.gmra.mxu0 %v714
        %v729 = vpop.f32.mrf.mxu0
        %v730 = vadd.f32 0.0, %v729
        %v731 = vpop.f32.mrf.mxu0
        %732 = vdwg.mxu0
        %733 = vst.msk [vmem:[#allocation2] sm:$0xff] %vm681, %v730
        %v735 = vunpack.c.l.b16 %v678
        %v736 = vpack.c.b16 %v735, %v735
        %737 = vrot.lane.b32.xlu0 %v736, 120
        %v738 = vpop.permute.xlu0 %737
        %v740 = vunpack.c.l.b16 %v679
        %v741 = vpack.c.b16 %v740, %v740
        %742 = vrot.lane.b32.xlu0 %v741, 120
        %v743 = vpop.permute.xlu0 %742
        %v745 = vsel %vm681, %v738, 0
        %v748 = vsel %vm681, %v743, 0
        %750 = vmatpush.bf16.xpose.msra.mxu0 0
        %751 = vmatpush.bf16.xpose.msra.mxu0 0
        %752 = vmatpush.bf16.xpose.msra.mxu0 0
        %753 = vmatpush.bf16.xpose.msra.mxu0 0
        %754 = vmatpush.bf16.xpose.msra.mxu0 0
        %755 = vmatpush.bf16.xpose.msra.mxu0 0
        %756 = vmatpush.bf16.xpose.msra.mxu0 0
        %757 = vmatpush.bf16.xpose.msra.mxu0 %v748
        %758 = vmatmul.bf16.gmra.mxu0 %v745
        %v759 = vpop.f32.mrf.mxu0
        %v760 = vadd.f32 0.0, %v759
        %v761 = vpop.f32.mrf.mxu0
        %762 = vdwg.mxu0
        %v763 = vsel %vm681, %v760, -inf
        %764 = vmax.xlane.f32.xlu0 %v763
        %v765 = vpop.xlane.xlu0 %764
        %v766 = vsub.f32 %v760, %v765
        %v767 = vmul.f32 %v766, 1.442695
        %v768 = vpow.pop %v767
        %v769 = vsel %vm681, %v768, 0.0
        %770 = vadd.xlane.f32.xlu0 %v769
        %v771 = vpop.xlane.xlu0 %770
        %v772 = vrcp.pop %v771
        %v773 = vmul.f32 %v768, %v772
        %v774 = vpack.c.bf16 %v773, %v773
        %v776 = vunpack.c.l.b16 %v680
        %v777 = vpack.c.b16 %v776, %v776
        %778 = vrot.lane.b32.xlu0 %v777, 120
        %v779 = vpop.permute.xlu0 %778
        %v781 = vsel %vm681, %v774, 0
        %v784 = vsel %vm716, %v779, 0
        %786 = vmatpush.bf16.msra.mxu0 0
        %787 = vmatpush.bf16.msra.mxu0 0
        %788 = vmatpush.bf16.msra.mxu0 0
        %789 = vmatpush.bf16.msra.mxu0 0
        %790 = vmatpush.bf16.msra.mxu0 0
        %791 = vmatpush.bf16.msra.mxu0 0
        %792 = vmatpush.bf16.msra.mxu0 0
        %793 = vmatpush.bf16.msra.mxu0 %v784
        %794 = vmatmul.bf16.gmra.mxu0 %v781
        %v795 = vpop.f32.mrf.mxu0
        %v796 = vadd.f32 0.0, %v795
        %v797 = vpop.f32.mrf.mxu0
        %798 = vdwg.mxu0
        %800 = vrot.lane.b32.xlu0 %v796, 8
        %v801 = vpop.permute.xlu0 %800
        %vm803 = vcmask 130112
        %804 = vst.msk [vmem:[#allocation2] sm:$0xff] %vm803, %v801
        %805 = vrot.lane.b32.xlu0 %v736, 112
        %v806 = vpop.permute.xlu0 %805
        %807 = vrot.lane.b32.xlu0 %v741, 112
        %v808 = vpop.permute.xlu0 %807
        %v810 = vsel %vm681, %v806, 0
        %v813 = vsel %vm681, %v808, 0
        %815 = vmatpush.bf16.xpose.msra.mxu0 0
        %816 = vmatpush.bf16.xpose.msra.mxu0 0
        %817 = vmatpush.bf16.xpose.msra.mxu0 0
        %818 = vmatpush.bf16.xpose.msra.mxu0 0
        %819 = vmatpush.bf16.xpose.msra.mxu0 0
        %820 = vmatpush.bf16.xpose.msra.mxu0 0
        %821 = vmatpush.bf16.xpose.msra.mxu0 0
        %822 = vmatpush.bf16.xpose.msra.mxu0 %v813
        %823 = vmatmul.bf16.gmra.mxu0 %v810
        %v824 = vpop.f32.mrf.mxu0
        %v825 = vadd.f32 0.0, %v824
        %v826 = vpop.f32.mrf.mxu0
        %827 = vdwg.mxu0
        %v828 = vsel %vm681, %v825, -inf
        %829 = vmax.xlane.f32.xlu0 %v828
        %v830 = vpop.xlane.xlu0 %829
        %v831 = vsub.f32 %v825, %v830
        %v832 = vmul.f32 %v831, 1.442695
        %v833 = vpow.pop %v832
        %v834 = vsel %vm681, %v833, 0.0
        %835 = vadd.xlane.f32.xlu0 %v834
        %v836 = vpop.xlane.xlu0 %835
        %v837 = vrcp.pop %v836
        %v838 = vmul.f32 %v833, %v837
        %v839 = vpack.c.bf16 %v838, %v838
        %840 = vrot.lane.b32.xlu0 %v777, 112
        %v841 = vpop.permute.xlu0 %840
        %v843 = vsel %vm681, %v839, 0
        %v846 = vsel %vm716, %v841, 0
        %848 = vmatpush.bf16.msra.mxu0 0
        %849 = vmatpush.bf16.msra.mxu0 0
        %850 = vmatpush.bf16.msra.mxu0 0
        %851 = vmatpush.bf16.msra.mxu0 0
        %852 = vmatpush.bf16.msra.mxu0 0
        %853 = vmatpush.bf16.msra.mxu0 0
        %854 = vmatpush.bf16.msra.mxu0 0
        %855 = vmatpush.bf16.msra.mxu0 %v846
        %856 = vmatmul.bf16.gmra.mxu0 %v843
        %v857 = vpop.f32.mrf.mxu0
        %v858 = vadd.f32 0.0, %v857
        %v859 = vpop.f32.mrf.mxu0
        %860 = vdwg.mxu0
        %862 = vrot.lane.b32.xlu0 %v858, 16
        %v863 = vpop.permute.xlu0 %862
        %vm865 = vcmask 195712
        %866 = vst.msk [vmem:[#allocation2] sm:$0xff] %vm865, %v863
        %867 = vrot.lane.b32.xlu0 %v736, 104
        %v868 = vpop.permute.xlu0 %867
        %869 = vrot.lane.b32.xlu0 %v741, 104
        %v870 = vpop.permute.xlu0 %869
        %v872 = vsel %vm681, %v868, 0
        %v875 = vsel %vm681, %v870, 0
        %877 = vmatpush.bf16.xpose.msra.mxu0 0
        %878 = vmatpush.bf16.xpose.msra.mxu0 0
        %879 = vmatpush.bf16.xpose.msra.mxu0 0
        %880 = vmatpush.bf16.xpose.msra.mxu0 0
        %881 = vmatpush.bf16.xpose.msra.mxu0 0
        %882 = vmatpush.bf16.xpose.msra.mxu0 0
        %883 = vmatpush.bf16.xpose.msra.mxu0 0
        %884 = vmatpush.bf16.xpose.msra.mxu0 %v875
        %885 = vmatmul.bf16.gmra.mxu0 %v872
        %v886 = vpop.f32.mrf.mxu0
        %v887 = vadd.f32 0.0, %v886
        %v888 = vpop.f32.mrf.mxu0
        %889 = vdwg.mxu0
        %v890 = vsel %vm681, %v887, -inf
        %891 = vmax.xlane.f32.xlu0 %v890
        %v892 = vpop.xlane.xlu0 %891
        %v893 = vsub.f32 %v887, %v892
        %v894 = vmul.f32 %v893, 1.442695
        %v895 = vpow.pop %v894
        %v896 = vsel %vm681, %v895, 0.0
        %897 = vadd.xlane.f32.xlu0 %v896
        %v898 = vpop.xlane.xlu0 %897
        %v899 = vrcp.pop %v898
        %v900 = vmul.f32 %v895, %v899
        %v901 = vpack.c.bf16 %v900, %v900
        %902 = vrot.lane.b32.xlu0 %v777, 104
        %v903 = vpop.permute.xlu0 %902
        %v905 = vsel %vm681, %v901, 0
        %v908 = vsel %vm716, %v903, 0
        %910 = vmatpush.bf16.msra.mxu0 0
        %911 = vmatpush.bf16.msra.mxu0 0
        %912 = vmatpush.bf16.msra.mxu0 0
        %913 = vmatpush.bf16.msra.mxu0 0
        %914 = vmatpush.bf16.msra.mxu0 0
        %915 = vmatpush.bf16.msra.mxu0 0
        %916 = vmatpush.bf16.msra.mxu0 0
        %917 = vmatpush.bf16.msra.mxu0 %v908
        %918 = vmatmul.bf16.gmra.mxu0 %v905
        %v919 = vpop.f32.mrf.mxu0
        %v920 = vadd.f32 0.0, %v919
        %v921 = vpop.f32.mrf.mxu0
        %922 = vdwg.mxu0
        %924 = vrot.lane.b32.xlu0 %v920, 24
        %v925 = vpop.permute.xlu0 %924
        %vm927 = vcmask 261312
        %928 = vst.msk [vmem:[#allocation2] sm:$0xff] %vm927, %v925
        %v929 = vld [vmem:[#allocation2] sm:$0xff]
        %v930 = vpack.c.bf16 %v929, %v929
        %v931 = vld [vmem:[#allocation14] sm:$0xf]
        %v932 = vld [vmem:[#allocation14 + $0x4] sm:$0xf]
        %v933 = vld [vmem:[#allocation14 + $0x8] sm:$0xf]
        %v934 = vld [vmem:[#allocation14 + $0xc] sm:$0xf]
        %v935 = vld [vmem:[%s10] sm:$0x1]
        %v937 = vperm.slane %v935, 0
        %v943 = vunpack.c.l.b16 %v931
        %v944 = vunpack.c.l.b16 %v932
        %v945 = vunpack.c.l.b16 %v933
        %v946 = vunpack.c.l.b16 %v934
        %v947 = vpack.c.b16 %v944, %v943
        %v948 = vpack.c.b16 %v946, %v945
        %v952 = vsel %vm589, %v930, 0
        %954 = vmatpush.bf16.msra.mxu0 0
        %955 = vmatpush.bf16.msra.mxu0 0
        %956 = vmatpush.bf16.msra.mxu0 0
        %957 = vmatpush.bf16.msra.mxu0 0
        %958 = vmatpush.bf16.msra.mxu0 0
        %959 = vmatpush.bf16.msra.mxu0 0
        %960 = vmatpush.bf16.msra.mxu0 %v948
        %961 = vmatpush.bf16.msra.mxu0 %v947
        %962 = vmatmul.bf16.gmra.mxu0 %v952
        %v963 = vpop.f32.mrf.mxu0
        %v964 = vadd.f32 %v937, %v963
        %v965 = vpop.f32.mrf.mxu0
        %966 = vdwg.mxu0
        %967 = vst.msk [vmem:[%s561] sm:$0xff] %vm589, %v964
        %s968 = sand.u32 %s303, 1
        %s969 = scalar_lea.sflag [#allocation5], %s968
        %s970 = sand.u32 %s303, 1
        %s971 = smul.addr %s970, 8
        %s972 = scalar_lea.vmem [#allocation15], %s971
        // Predicated region
        $region93: #{tpu_custom_call.1} parent=63 // pred_check
          %p973 = pneg %p313
        $region94: #{tpu_custom_call.1} parent=63 // pred_check_branch
          %975 = sbr.rel (%p973) target = $region96
        $region95: #{tpu_custom_call.1} parent=63 // pred_region
          %977 = vsyncadd %s969, 0
          %s978 = sadd.s32 %s38, %s37
          %s979 = smul.addr %s978, 8
          %s980 = scalar_lea.hbm %s11, %s979
          %s982 = sshll.u32 %s972, 4
          %s983 = int_to_ptr.vmem [resolvable:$true] %s982
          %s984 = sshll.u32 %s980, 4
          %s985 = int_to_ptr.hbm [resolvable:$true] %s984
          %987 = dma.vmem_to_hbm [thread:$0]  %s983, 128, %s985, %s969
        $region96: #{tpu_custom_call.1} parent=63 // pred_fallthru
          _
      $region64: #{tpu_custom_call.1} parent=5 // pred_fallthru
        _
      %p988 = scmp.le.s32.totalorder 2, %s28
      // Predicated region
      $region97: #{tpu_custom_call.1} parent=5 // pred_check
        %p989 = pneg %p988
      $region98: #{tpu_custom_call.1} parent=5 // pred_check_branch
        %991 = sbr.rel (%p989) target = $region100
      $region99: #{tpu_custom_call.1} parent=5 // pred_region
        %s992 = ssub.s32 %s28, 2
        // Predicated region
        $region101: #{tpu_custom_call.1} parent=99 // pred_check
          %p993 = pneg %p319
        $region102: #{tpu_custom_call.1} parent=99 // pred_check_branch
          %995 = sbr.rel (%p993) target = $region104
        $region103: #{tpu_custom_call.1} parent=99 // pred_region
          %s996 = sand.u32 %s304, 1
          %s997 = scalar_lea.sflag [#allocation5], %s996
          %s998 = sand.u32 %s304, 1
          %s999 = smul.addr %s998, 8
          %s1000 = scalar_lea.vmem [#allocation15], %s999
          %1002 = dma.done %s997, 128
        $region104: #{tpu_custom_call.1} parent=99 // pred_fallthru
          _
      $region100: #{tpu_custom_call.1} parent=5 // pred_fallthru
        _
    $region6: #{tpu_custom_call.1} parent=1 // loop_footer
      %s32 = sadd.s32 1, %s28
    $region7: #{tpu_custom_call.1} parent=1 // loop_footer_branch
      %27 = sbr.rel target = $region3
    $region8: #{tpu_custom_call.1} parent=1 // loop_exit
      _
    %1003 = vsyncpa [#allocation4], 1
    %s1004 = scalar_lea.sflag [#allocation4], 1
    %1005 = vsyncpa %s1004, 1
    %1006 = vsyncpa [#allocation7], 1
    %s1007 = scalar_lea.sflag [#allocation7], 1
    %1008 = vsyncpa %s1007, 1
    %1009 = vsyncpa [#allocation10], 1
    %1010 = vsyncpa [#allocation13], 1
    %1011 = vsyncpa [#allocation5], 1
    %s1012 = scalar_lea.sflag [#allocation5], 1
    %1013 = vsyncpa %s1012, 1

</llo_original>
